<compile_context>
chip_gen: v5e
topology: v5e:2x2
jax: 0.10.0
libtpu: 0.0.40
codegen_flags: <defaults>
</compile_context>

<pallas_src>
import jax
import jax.numpy as jnp
from jax.experimental import pallas as pl
from jax.experimental.pallas import tpu as pltpu


def _round_up(x: int, m: int) -> int:
    return ((x + m - 1) // m) * m


def _tpu_config():
    """Per-generation tiling / VMEM budget defaults."""
    vmem_cap = 128 * 1024 * 1024
    kind = ""
    try:
        info = pltpu.get_tpu_info()
        vmem_cap = int(getattr(info, "vmem_capacity_bytes", vmem_cap))
    except Exception:
        pass
    try:
        kind = jax.devices()[0].device_kind.lower()
    except Exception:
        pass

    if vmem_cap <= 64 * 1024 * 1024:
        # v7x-class: 64 MiB VMEM per TC -> leave headroom for Mosaic scratch.
        return dict(vmem_limit=56 << 20, lane_align=256, tile_m=512, tile_h=512)
    if "v5" in kind:
        # v5e: 128 MiB VMEM, 4x128 MXU -> 128-lane alignment is enough.
        return dict(vmem_limit=100 << 20, lane_align=128, tile_m=512, tile_h=512)
    # v6e (and other 128 MiB chips): big row tile, 256-aligned lanes.
    return dict(vmem_limit=100 << 20, lane_align=256, tile_m=1024, tile_h=512)


def _ffn_kernel(x_ref, w1_ref, b1_ref, w2_ref, b2_ref, o_ref, acc_ref):
    # x_ref:  (TM, Dp) bf16    w1_ref: (Dp, TH) bf16   b1_ref: (1, TH) f32
    # w2_ref: (TH, Dp) bf16    b2_ref: (1, Dp)  f32
    # o_ref:  (TM, Dp) out dtype              acc_ref: (TM, Dp) f32 scratch
    k = pl.program_id(1)

    @pl.when(k == 0)
    def _():
        acc_ref[...] = jnp.zeros_like(acc_ref)

    # Linear1 (MXU, bf16 in / f32 out) + bias + ReLU, per hidden chunk.
    h = jnp.dot(x_ref[...], w1_ref[...], preferred_element_type=jnp.float32)
    h = jnp.maximum(h + b1_ref[...], 0.0)

    # Dropout(p=0.1): identity (eval mode).  See TODO at top of file.

    # Linear2: accumulate partial products over hidden chunks in f32.
    acc_ref[...] += jnp.dot(h.astype(w2_ref.dtype), w2_ref[...],
                            preferred_element_type=jnp.float32)

    @pl.when(k == pl.num_programs(1) - 1)
    def _():
        o_ref[...] = (acc_ref[...] + b2_ref[...]).astype(o_ref.dtype)


def make_feed_forward(w1, b1, w2, b2, *, tile_m=None, tile_h=None,
                      compute_dtype=jnp.bfloat16, out_dtype=None):
    """Pre-pads/casts the weights once and returns a jitted forward(x).

    Weights are stored as (in_features, out_features) so the kernel does x @ W.
    """
    cfg = _tpu_config()
    tile_m_default = cfg["tile_m"] if tile_m is None else tile_m
    tile_h = cfg["tile_h"] if tile_h is None else tile_h
    lane_align = cfg["lane_align"]
    vmem_limit = cfg["vmem_limit"]

    d_model, hidden = w1.shape
    assert w2.shape == (hidden, d_model)
    assert b1.shape == (hidden,) and b2.shape == (d_model,)

    d_pad = _round_up(d_model, lane_align)
    tile_h = min(tile_h, _round_up(hidden, 128))
    h_pad = _round_up(hidden, tile_h)

    # ---- one-time weight cast + pad (kept OUT of the per-call path) ---------
    w1p = jnp.pad(w1.astype(compute_dtype),
                  ((0, d_pad - d_model), (0, h_pad - hidden)))
    w2p = jnp.pad(w2.astype(compute_dtype),
                  ((0, h_pad - hidden), (0, d_pad - d_model)))
    b1p = jnp.pad(b1.astype(jnp.float32), (0, h_pad - hidden)).reshape(1, h_pad)
    b2p = jnp.pad(b2.astype(jnp.float32), (0, d_pad - d_model)).reshape(1, d_pad)

    cdt_b = jnp.dtype(compute_dtype).itemsize

    def _vmem_estimate(tm, out_itemsize):
        # double-buffered inputs/outputs + f32 accumulator scratch
        return (2 * tm * d_pad * cdt_b                      # x
                + 2 * d_pad * tile_h * cdt_b                # W1
                + 2 * tile_h * d_pad * cdt_b                # W2
                + 2 * 8 * tile_h * 4 + 2 * 8 * d_pad * 4    # biases (sublane pad)
                + 2 * tm * d_pad * out_itemsize             # out
                + tm * d_pad * 4)                           # acc scratch

    def _forward_impl(x, w1p, b1p, w2p, b2p):
        batch, seq, d_in = x.shape
        assert d_in == d_model
        out_dt = jnp.dtype(x.dtype if out_dtype is None else out_dtype)
        n = batch * seq

        # ---- choose row tile: fit VMEM budget, clamp to rows, keep >=2 tiles
        tm = tile_m_default
        while tm > 64 and _vmem_estimate(tm, out_dt.itemsize) > 0.85 * vmem_limit:
            tm //= 2
        tm = min(tm, _round_up(n, 8))
        n_pad = _round_up(n, tm)
        if n_pad // tm < 2 and n > 8:
            # keep the "parallel" row axis >= 2 tiles (feeds both v7x TCs)
            tm = _round_up(-(-n // 2), 8)
            n_pad = _round_up(n, tm)

        # ---- activation cast / pad (skipped when already aligned) ----------
        x2d = x.reshape(n, d_model)
        if x2d.dtype != compute_dtype:
            x2d = x2d.astype(compute_dtype)
        if (n_pad, d_pad) != (n, d_model):
            x2d = jnp.pad(x2d, ((0, n_pad - n), (0, d_pad - d_model)))

        grid = (n_pad // tm, h_pad // tile_h)   # rows parallel, hidden reduce
        n_row_tiles = grid[0]

        cost = pl.CostEstimate(
            flops=4 * n_pad * d_pad * h_pad,                 # two matmuls
            transcendentals=0,
            bytes_accessed=(
                n_pad * d_pad * cdt_b                        # x read
                + n_row_tiles * 2 * d_pad * h_pad * cdt_b    # W1+W2 per row tile
                + n_row_tiles * (h_pad + d_pad) * 4          # biases per row tile
                + n_pad * d_pad * out_dt.itemsize),          # output write
        )

        out2d = pl.pallas_call(
            _ffn_kernel,
            out_shape=jax.ShapeDtypeStruct((n_pad, d_pad), out_dt),
            grid_spec=pltpu.PrefetchScalarGridSpec(
                num_scalar_prefetch=0,
                grid=grid,
                in_specs=[
                    pl.BlockSpec((tm, d_pad),     lambda i, k: (i, 0)),  # x
                    pl.BlockSpec((d_pad, tile_h), lambda i, k: (0, k)),  # W1
                    pl.BlockSpec((1, tile_h),     lambda i, k: (0, k)),  # b1
                    pl.BlockSpec((tile_h, d_pad), lambda i, k: (k, 0)),  # W2
                    pl.BlockSpec((1, d_pad),      lambda i, k: (0, 0)),  # b2
                ],
                out_specs=pl.BlockSpec((tm, d_pad), lambda i, k: (i, 0)),
                scratch_shapes=[pltpu.VMEM((tm, d_pad), jnp.float32)],
            ),
            compiler_params=pltpu.CompilerParams(
                dimension_semantics=("parallel", "arbitrary"),
                vmem_limit_bytes=vmem_limit,
            ),
            cost_estimate=cost,
        )(x2d, w1p, b1p, w2p, b2p)

        if (n_pad, d_pad) != (n, d_model):
            out2d = out2d[:n, :d_model]
        return out2d.reshape(batch, seq, d_model)

    _forward_jit = jax.jit(_forward_impl)

    def forward(x):
        return _forward_jit(x, w1p, b1p, w2p, b2p)

    return forward


def init_params(key, d_model, hidden):
    """Deterministic init mimicking nn.Linear (uniform +/- 1/sqrt(fan_in))."""
    k1, k2, k3, k4 = jax.random.split(key, 4)
    bound1 = 1.0 / (d_model ** 0.5)
    bound2 = 1.0 / (hidden ** 0.5)
    # stored as (in_features, out_features) so the kernel does x @ W directly
    w1 = jax.random.uniform(k1, (d_model, hidden), jnp.float32, -bound1, bound1)
    b1 = jax.random.uniform(k2, (hidden,), jnp.float32, -bound1, bound1)
    w2 = jax.random.uniform(k3, (hidden, d_model), jnp.float32, -bound2, bound2)
    b2 = jax.random.uniform(k4, (d_model,), jnp.float32, -bound2, bound2)
    return w1, b1, w2, b2


if __name__ == "__main__":
    batch, seq, d_model, hidden = 2, 8, 32, 64
    key = jax.random.PRNGKey(0)
    kx, kp = jax.random.split(key)

    x = jax.random.normal(kx, (batch, seq, d_model), jnp.float32)
    w1, b1, w2, b2 = init_params(kp, d_model, hidden)

    ffn = make_feed_forward(w1, b1, w2, b2)
    out = jax.block_until_ready(ffn(x))

    # reference in plain JAX f32 (eval-mode dropout == identity); bf16 MXU path
    # needs a looser tolerance than pure f32.
    ref = jnp.maximum(x @ w1 + b1, 0.0) @ w2 + b2
    assert out.shape == x.shape
    assert jnp.allclose(out, ref, atol=5e-2, rtol=5e-2), \
        float(jnp.max(jnp.abs(out - ref)))

    print("KERNEL_OK")
</pallas_src>

<mosaic_0001>
module attributes {stable_mosaic.version = 11 : i64} {
  func.func @_ffn_kernel(%arg0: i32, %arg1: i32, %arg2: memref<8x256xbf16, #tpu.memory_space<vmem>>, %arg3: memref<256x128xbf16, #tpu.memory_space<vmem>>, %arg4: memref<1x128xf32, #tpu.memory_space<vmem>>, %arg5: memref<128x256xbf16, #tpu.memory_space<vmem>>, %arg6: memref<1x256xf32, #tpu.memory_space<vmem>>, %arg7: memref<8x256xf32, #tpu.memory_space<vmem>>, %arg8: memref<8x256xf32, #tpu.memory_space<vmem>>) attributes {dimension_semantics = [#tpu.dimension_semantics<parallel>, #tpu.dimension_semantics<arbitrary>], iteration_bounds = array<i64: 2, 1>, scalar_prefetch = 0 : i64, scratch_operands = 1 : i64, tpu.core_type = #tpu.core_type<tc>, window_params = [{transform_indices = @transform_0, window_bounds = array<i64: 8, 256>}, {transform_indices = @transform_1, window_bounds = array<i64: 256, 128>}, {transform_indices = @transform_2, window_bounds = array<i64: 1, 128>}, {transform_indices = @transform_3, window_bounds = array<i64: 128, 256>}, {pipeline_mode = #tpu.pipeline_mode<synchronous>, transform_indices = @transform_4, window_bounds = array<i64: 1, 256>}, {transform_indices = @transform_5, window_bounds = array<i64: 8, 256>}]} {
    %c0_i32 = arith.constant 0 : i32
    %0 = arith.cmpi eq, %arg1, %c0_i32 : i32
    %1 = arith.extui %0 : i1 to i32
    %c0_i32_0 = arith.constant 0 : i32
    %2 = arith.cmpi ne, %1, %c0_i32_0 : i32
    scf.if %2 {
      %cst_16 = arith.constant 0.000000e+00 : f32
      %20 = vector.broadcast %cst_16 : f32 to vector<8x256xf32>
      %c0_17 = arith.constant 0 : index
      %c0_18 = arith.constant 0 : index
      %21 = vector.load %arg8[%c0_17, %c0_18] : memref<8x256xf32, #tpu.memory_space<vmem>>, vector<8x256xf32>
      tpu.vector_store %arg8[%c0_17, %c0_18], %20 {strides = array<i32>} : memref<8x256xf32, #tpu.memory_space<vmem>>, vector<8x256xf32>,
    } else {
    }
    %c0 = arith.constant 0 : index
    %c0_1 = arith.constant 0 : index
    %3 = vector.load %arg2[%c0, %c0_1] : memref<8x256xbf16, #tpu.memory_space<vmem>>, vector<8x256xbf16>
    %c0_2 = arith.constant 0 : index
    %c0_3 = arith.constant 0 : index
    %4 = vector.load %arg3[%c0_2, %c0_3] : memref<256x128xbf16, #tpu.memory_space<vmem>>, vector<256x128xbf16>
    %cst = arith.constant dense<0.000000e+00> : vector<8x128xf32>
    %5 = tpu.matmul %3, %4, %cst {dimension_numbers = #tpu.dot_dimension_numbers<[1], [0], [0], [1], [0, 0, 1, 1], [], []>} : vector<8x256xbf16>, vector<256x128xbf16>, vector<8x128xf32> -> vector<8x128xf32>
    %c0_4 = arith.constant 0 : index
    %c0_5 = arith.constant 0 : index
    %6 = vector.load %arg4[%c0_4, %c0_5] : memref<1x128xf32, #tpu.memory_space<vmem>>, vector<1x128xf32>
    %7 = vector.broadcast %6 : vector<1x128xf32> to vector<8x128xf32>
    %8 = arith.addf %5, %7 : vector<8x128xf32>
    %cst_6 = arith.constant 0.000000e+00 : f32
    %9 = vector.broadcast %cst_6 : f32 to vector<8x128xf32>
    %10 = arith.maximumf %8, %9 : vector<8x128xf32>
    %c0_7 = arith.constant 0 : index
    %c0_8 = arith.constant 0 : index
    %11 = vector.load %arg8[%c0_7, %c0_8] : memref<8x256xf32, #tpu.memory_space<vmem>>, vector<8x256xf32>
    %12 = arith.truncf %10 : vector<8x128xf32> to vector<8x128xbf16>
    %c0_9 = arith.constant 0 : index
    %c0_10 = arith.constant 0 : index
    %13 = vector.load %arg5[%c0_9, %c0_10] : memref<128x256xbf16, #tpu.memory_space<vmem>>, vector<128x256xbf16>
    %cst_11 = arith.constant dense<0.000000e+00> : vector<8x256xf32>
    %14 = tpu.matmul %12, %13, %cst_11 {dimension_numbers = #tpu.dot_dimension_numbers<[1], [0], [0], [1], [0, 0, 1, 1], [], []>} : vector<8x128xbf16>, vector<128x256xbf16>, vector<8x256xf32> -> vector<8x256xf32>
    %15 = arith.addf %11, %14 : vector<8x256xf32>
    %c0_12 = arith.constant 0 : index
    %c0_13 = arith.constant 0 : index
    %16 = vector.load %arg8[%c0_12, %c0_13] : memref<8x256xf32, #tpu.memory_space<vmem>>, vector<8x256xf32>
    tpu.vector_store %arg8[%c0_12, %c0_13], %15 {strides = array<i32>} : memref<8x256xf32, #tpu.memory_space<vmem>>, vector<8x256xf32>,
    %c0_i32_14 = arith.constant 0 : i32
    %17 = arith.cmpi eq, %arg1, %c0_i32_14 : i32
    %18 = arith.extui %17 : i1 to i32
    %c0_i32_15 = arith.constant 0 : i32
    %19 = arith.cmpi ne, %18, %c0_i32_15 : i32
    scf.if %19 {
      %c0_16 = arith.constant 0 : index
      %c0_17 = arith.constant 0 : index
      %20 = vector.load %arg8[%c0_16, %c0_17] : memref<8x256xf32, #tpu.memory_space<vmem>>, vector<8x256xf32>
      %c0_18 = arith.constant 0 : index
      %c0_19 = arith.constant 0 : index
      %21 = vector.load %arg6[%c0_18, %c0_19] : memref<1x256xf32, #tpu.memory_space<vmem>>, vector<1x256xf32>
      %22 = vector.broadcast %21 : vector<1x256xf32> to vector<8x256xf32>
      %23 = arith.addf %20, %22 : vector<8x256xf32>
      %c0_20 = arith.constant 0 : index
      %c0_21 = arith.constant 0 : index
      %24 = vector.load %arg7[%c0_20, %c0_21] : memref<8x256xf32, #tpu.memory_space<vmem>>, vector<8x256xf32>
      tpu.vector_store %arg7[%c0_20, %c0_21], %23 {strides = array<i32>} : memref<8x256xf32, #tpu.memory_space<vmem>>, vector<8x256xf32>,
    } else {
    }
    return
  }
  func.func @transform_0(%arg0: i32, %arg1: i32) -> (i32, i32) {
    %c0_i32 = arith.constant 0 : i32
    %c0_i32_0 = arith.constant 0 : i32
    return %arg0, %c0_i32 : i32, i32
  }
  func.func @transform_1(%arg0: i32, %arg1: i32) -> (i32, i32) {
    %c0_i32 = arith.constant 0 : i32
    %c0_i32_0 = arith.constant 0 : i32
    return %c0_i32, %arg1 : i32, i32
  }
  func.func @transform_2(%arg0: i32, %arg1: i32) -> (i32, i32) {
    %c0_i32 = arith.constant 0 : i32
    %c0_i32_0 = arith.constant 0 : i32
    return %c0_i32, %arg1 : i32, i32
  }
  func.func @transform_3(%arg0: i32, %arg1: i32) -> (i32, i32) {
    %c0_i32 = arith.constant 0 : i32
    %c0_i32_0 = arith.constant 0 : i32
    return %arg1, %c0_i32 : i32, i32
  }
  func.func @transform_4(%arg0: i32, %arg1: i32) -> (i32, i32) {
    %c0_i32 = arith.constant 0 : i32
    %c0_i32_0 = arith.constant 0 : i32
    %c0_i32_1 = arith.constant 0 : i32
    return %c0_i32, %c0_i32_0 : i32, i32
  }
  func.func @transform_5(%arg0: i32, %arg1: i32) -> (i32, i32) {
    %c0_i32 = arith.constant 0 : i32
    %c0_i32_0 = arith.constant 0 : i32
    return %arg0, %c0_i32 : i32, i32
  }
}

</mosaic_0001>

<llo_original>
// kernel: _forward_impl.1
$region0: #{_forward_impl.1}
  #allocation0 [shape = 'u32[]', space=smem, size = 0x4, offset = 0x4, fixed_abs, tag = 'smem constant byte address 0x4 - core index']
  #allocation1 [shape = 'u32[72,128]{1,0:T(1,128)}', space=vmem, size = 0x9000, scoped, tag = 'internal scratch']
  #allocation2 [shape = 'f32[8,256]{1,0:T(8,128)}', space=vmem, size = 0x2000, scoped, tag = 'scratch operand']
  %s0 = inlined_call_operand.vmem [shape: bf16[16,256], index: 0, kind: input, shape index: {}]
  %s1 = inlined_call_operand.hbm [shape: bf16[256,128], index: 1, kind: input, shape index: {}]
  %s2 = inlined_call_operand.vmem [shape: f32[1,128], index: 2, kind: input, shape index: {}]
  %s3 = inlined_call_operand.hbm [shape: bf16[128,256], index: 3, kind: input, shape index: {}]
  %s4 = inlined_call_operand.vmem [shape: f32[1,256], index: 4, kind: input, shape index: {}]
  %s5 = inlined_call_operand.vmem [shape: f32[16,256], index: 5, kind: output, shape index: {}]
  %s6 = sld [smem:[#allocation0]]
  $region69: #{_forward_impl.1} parent=0
    _
  %s8 = ssub.s32 1, %s6
  %s9 = scalar_select 0, %s8, %s6
  $region1: #{_forward_impl.1} parent=0
    #allocation3 [shape = 'u8[65536]{0}', space=vmem, size = 0x10000, scoped, tag = 'input window, operand 1, single buffered']
    #allocation4 [shape = 's32[2]{0}', space=sflag, size = 0x8, scoped, tag = 'scoped memory for _forward_impl.1']
    #allocation5 [shape = 'u8[65536]{0}', space=vmem, size = 0x10000, scoped, tag = 'input window, operand 3, single buffered']
    #allocation6 [shape = 's32[1]{0}', space=sflag, size = 0x4, scoped, tag = 'scoped memory for _forward_impl.1']
    %10 = vsyncpa [#allocation4], 0
    %11 = vsyncpa [#allocation6], 0
    loop: start=0, step=1, limit=4
    $region2: #{_forward_impl.1} parent=1 // loop_pre_header
      _
    $region3: #{_forward_impl.1} parent=1 // loop_header
      %s13 = sphi 0, %s17
      %p14 = scmp.ge.s32.totalorder %s13, 4
      %s20 = sphi 0, %s32
      %s21 = sphi 0, %s28
      %s22 = sphi 0, %s20
      %s23 = sphi 0, %s21
      %s24 = sphi 0, %s22
      %s25 = sphi 0, %s23
      %s35 = sphi 0, %s37
      %s38 = sphi 0, %s35
      %s39 = sphi 0, %s38
      %s55 = sphi 0, %s39
      %s61 = sphi 0, %s63
      %s64 = sphi 0, %s61
      %s65 = sphi 0, %s64
      %s81 = sphi 0, %s65
      %s87 = sphi 0, %s89
      %s90 = sphi 0, %s87
      %s91 = sphi 0, %s90
      %s107 = sphi 0, %s91
      %s113 = sphi 0, %s115
      %s116 = sphi 0, %s113
      %s117 = sphi 0, %s116
      %s133 = sphi 0, %s117
      %s137 = sphi 0, %s137
      %s139 = sphi 0, %s137
      %s140 = sphi 0, %s139
      %s154 = sphi 0, %s140
      %s160 = sphi 0, %s162
      %s163 = sphi 0, %s160
      %s164 = sphi 0, %s163
      %s180 = sphi 0, %s164
    $region4: #{_forward_impl.1} parent=1 // loop_header_branch
      %16 = sbr.rel (%p14) target = $region8
    $region5: #{_forward_impl.1} parent=1 // loop_body
      %s18 = ssub.s32 %s13, 1
      %s19 = ssub.s32 %s13, 2
      %s26 = sadd.s32 1, %s21
      %p27 = scmp.ge.s32.totalorder %s26, 1
      %s28 = scalar_select %p27, 0, %s26
      %s29 = sadd.s32 1, %s20
      %s30 = scalar_select %p27, %s29, %s20
      %p31 = scmp.ge.s32.totalorder %s30, 2
      %s32 = scalar_select %p31, 0, %s30
      %s33 = ssub.s32 %s20, %s32
      %p34 = scmp.eq.s32.totalorder %s33, 0
      %s36 = sadd.s32 %s35, 1
      %s37 = scalar_select %p34, %s35, %s36
      %p40 = pneg %p34
      %p41 = scmp.eq.s32.totalorder %s13, 1
      %p42 = por %p40, %p41
      %p43 = scmp.ne.s32.totalorder %s35, %s38
      %p44 = scmp.eq.s32.totalorder %s13, 0
      %p45 = por %p43, %p44
      %p46 = scmp.ne.s32.totalorder %s35, %s38
      %p47 = scmp.eq.s32.totalorder %s18, 1
      %p48 = por %p46, %p47
      %p49 = scmp.ne.s32.totalorder %s38, %s39
      %p50 = scmp.eq.s32.totalorder %s18, 0
      %p51 = por %p49, %p50
      %p52 = scmp.ne.s32.totalorder %s38, %s39
      %p53 = scmp.eq.s32.totalorder %s19, 1
      %p54 = por %p52, %p53
      %p56 = scmp.ne.s32.totalorder %s39, %s55
      %p57 = scmp.eq.s32.totalorder %s19, 0
      %p58 = por %p56, %p57
      %s59 = ssub.s32 %s21, %s28
      %p60 = scmp.eq.s32.totalorder %s59, 0
      %s62 = sadd.s32 %s61, 1
      %s63 = scalar_select %p60, %s61, %s62
      %p66 = pneg %p60
      %p67 = scmp.eq.s32.totalorder %s13, 1
      %p68 = por %p66, %p67
      %p69 = scmp.ne.s32.totalorder %s61, %s64
      %p70 = scmp.eq.s32.totalorder %s13, 0
      %p71 = por %p69, %p70
      %p72 = scmp.ne.s32.totalorder %s61, %s64
      %p73 = scmp.eq.s32.totalorder %s18, 1
      %p74 = por %p72, %p73
      %p75 = scmp.ne.s32.totalorder %s64, %s65
      %p76 = scmp.eq.s32.totalorder %s18, 0
      %p77 = por %p75, %p76
      %p78 = scmp.ne.s32.totalorder %s64, %s65
      %p79 = scmp.eq.s32.totalorder %s19, 1
      %p80 = por %p78, %p79
      %p82 = scmp.ne.s32.totalorder %s65, %s81
      %p83 = scmp.eq.s32.totalorder %s19, 0
      %p84 = por %p82, %p83
      %s85 = ssub.s32 %s21, %s28
      %p86 = scmp.eq.s32.totalorder %s85, 0
      %s88 = sadd.s32 %s87, 1
      %s89 = scalar_select %p86, %s87, %s88
      %p92 = pneg %p86
      %p93 = scmp.eq.s32.totalorder %s13, 1
      %p94 = por %p92, %p93
      %p95 = scmp.ne.s32.totalorder %s87, %s90
      %p96 = scmp.eq.s32.totalorder %s13, 0
      %p97 = por %p95, %p96
      %p98 = scmp.ne.s32.totalorder %s87, %s90
      %p99 = scmp.eq.s32.totalorder %s18, 1
      %p100 = por %p98, %p99
      %p101 = scmp.ne.s32.totalorder %s90, %s91
      %p102 = scmp.eq.s32.totalorder %s18, 0
      %p103 = por %p101, %p102
      %p104 = scmp.ne.s32.totalorder %s90, %s91
      %p105 = scmp.eq.s32.totalorder %s19, 1
      %p106 = por %p104, %p105
      %p108 = scmp.ne.s32.totalorder %s91, %s107
      %p109 = scmp.eq.s32.totalorder %s19, 0
      %p110 = por %p108, %p109
      %s111 = ssub.s32 %s21, %s28
      %p112 = scmp.eq.s32.totalorder %s111, 0
      %s114 = sadd.s32 %s113, 1
      %s115 = scalar_select %p112, %s113, %s114
      %p118 = pneg %p112
      %p119 = scmp.eq.s32.totalorder %s13, 1
      %p120 = por %p118, %p119
      %p121 = scmp.ne.s32.totalorder %s113, %s116
      %p122 = scmp.eq.s32.totalorder %s13, 0
      %p123 = por %p121, %p122
      %p124 = scmp.ne.s32.totalorder %s113, %s116
      %p125 = scmp.eq.s32.totalorder %s18, 1
      %p126 = por %p124, %p125
      %p127 = scmp.ne.s32.totalorder %s116, %s117
      %p128 = scmp.eq.s32.totalorder %s18, 0
      %p129 = por %p127, %p128
      %p130 = scmp.ne.s32.totalorder %s116, %s117
      %p131 = scmp.eq.s32.totalorder %s19, 1
      %p132 = por %p130, %p131
      %p134 = scmp.ne.s32.totalorder %s117, %s133
      %p135 = scmp.eq.s32.totalorder %s19, 0
      %p136 = por %p134, %p135
      %s138 = sadd.s32 %s137, 1
      %p141 = scmp.eq.s32.totalorder %s13, 1
      %p142 = scmp.ne.s32.totalorder %s137, %s139
      %p143 = scmp.eq.s32.totalorder %s13, 0
      %p144 = por %p142, %p143
      %p145 = scmp.ne.s32.totalorder %s137, %s139
      %p146 = scmp.eq.s32.totalorder %s18, 1
      %p147 = por %p145, %p146
      %p148 = scmp.ne.s32.totalorder %s139, %s140
      %p149 = scmp.eq.s32.totalorder %s18, 0
      %p150 = por %p148, %p149
      %p151 = scmp.ne.s32.totalorder %s139, %s140
      %p152 = scmp.eq.s32.totalorder %s19, 1
      %p153 = por %p151, %p152
      %p155 = scmp.ne.s32.totalorder %s140, %s154
      %p156 = scmp.eq.s32.totalorder %s19, 0
      %p157 = por %p155, %p156
      %s158 = ssub.s32 %s20, %s32
      %p159 = scmp.eq.s32.totalorder %s158, 0
      %s161 = sadd.s32 %s160, 1
      %s162 = scalar_select %p159, %s160, %s161
      %p165 = pneg %p159
      %p166 = scmp.eq.s32.totalorder %s13, 1
      %p167 = por %p165, %p166
      %p168 = scmp.ne.s32.totalorder %s160, %s163
      %p169 = scmp.eq.s32.totalorder %s13, 0
      %p170 = por %p168, %p169
      %p171 = scmp.ne.s32.totalorder %s160, %s163
      %p172 = scmp.eq.s32.totalorder %s18, 1
      %p173 = por %p171, %p172
      %p174 = scmp.ne.s32.totalorder %s163, %s164
      %p175 = scmp.eq.s32.totalorder %s18, 0
      %p176 = por %p174, %p175
      %p177 = scmp.ne.s32.totalorder %s163, %s164
      %p178 = scmp.eq.s32.totalorder %s19, 1
      %p179 = por %p177, %p178
      %p181 = scmp.ne.s32.totalorder %s164, %s180
      %p182 = scmp.eq.s32.totalorder %s19, 0
      %p183 = por %p181, %p182
      %p184 = scmp.le.s32.totalorder 1, %s13
      %p185 = scmp.lt.s32.totalorder %s13, 3
      %p186 = pnand %p184, %p185
      %p187 = pneg %p186
      // Predicated region
      $region9: #{_forward_impl.1} parent=5 // pred_check
        _
      $region10: #{_forward_impl.1} parent=5 // pred_check_branch
        %189 = sbr.rel (%p186) target = $region12
      $region11: #{_forward_impl.1} parent=5 // pred_region
        %s190 = ssub.s32 %s13, 1
        // Predicated region
        $region13: #{_forward_impl.1} parent=11 // pred_check
          %p191 = pneg %p77
        $region14: #{_forward_impl.1} parent=11 // pred_check_branch
          %193 = sbr.rel (%p191) target = $region16
        $region15: #{_forward_impl.1} parent=11 // pred_region
          %195 = vsyncadd [#allocation4], 0
          %s196 = smul.addr %s23, 4
          %s197 = scalar_lea.hbm %s1, %s196
          %s198 = sshll.u32 %s197, 4
          %s199 = int_to_ptr.hbm [resolvable:$true] %s198
          %s200 = sshll.u32 [#allocation3], 4
          %s201 = int_to_ptr.vmem [resolvable:$true] %s200
          %206 = dma.hbm_to_vmem [thread:$0]  %s199, 2048, %s201, [#allocation4], 64, 64, 4
        $region16: #{_forward_impl.1} parent=11 // pred_fallthru
          _
        // Predicated region
        $region17: #{_forward_impl.1} parent=11 // pred_check
          %p207 = pneg %p103
        $region18: #{_forward_impl.1} parent=11 // pred_check_branch
          %209 = sbr.rel (%p207) target = $region20
        $region19: #{_forward_impl.1} parent=11 // pred_region
          %p210 = scmp.lt.s32.totalorder %s23, 0
          %s211 = scalar_select %p210, %s23, 0
          %s212 = scalar_lea.vmem %s2, %s211
        $region20: #{_forward_impl.1} parent=11 // pred_fallthru
          _
        // Predicated region
        $region21: #{_forward_impl.1} parent=11 // pred_check
          %p213 = pneg %p129
        $region22: #{_forward_impl.1} parent=11 // pred_check_branch
          %215 = sbr.rel (%p213) target = $region24
        $region23: #{_forward_impl.1} parent=11 // pred_region
          %s216 = smul.u32 16, %s23
          %218 = vsyncadd [#allocation6], 0
          %s219 = smul.addr %s216, 2
          %s220 = smul.addr %s219, 4
          %s221 = scalar_lea.hbm %s3, %s220
          %s222 = sshll.u32 %s221, 4
          %s223 = int_to_ptr.hbm [resolvable:$true] %s222
          %s224 = sshll.u32 [#allocation5], 4
          %s225 = int_to_ptr.vmem [resolvable:$true] %s224
          %230 = dma.hbm_to_vmem [thread:$0]  %s223, 2048, %s225, [#allocation6], 128, 128, 8
        $region24: #{_forward_impl.1} parent=11 // pred_fallthru
          _
        // Predicated region
        $region25: #{_forward_impl.1} parent=11 // pred_check
          %p231 = pneg %p150
        $region26: #{_forward_impl.1} parent=11 // pred_check_branch
          %233 = sbr.rel (%p231) target = $region28
        $region27: #{_forward_impl.1} parent=11 // pred_region
          _
        $region28: #{_forward_impl.1} parent=11 // pred_fallthru
          _
      $region12: #{_forward_impl.1} parent=5 // pred_fallthru
        _
      %p234 = scmp.lt.s32.totalorder %s13, 2
      // Predicated region
      $region29: #{_forward_impl.1} parent=5 // pred_check
        %p235 = pneg %p234
      $region30: #{_forward_impl.1} parent=5 // pred_check_branch
        %237 = sbr.rel (%p235) target = $region32
      $region31: #{_forward_impl.1} parent=5 // pred_region
        // Predicated region
        $region33: #{_forward_impl.1} parent=31 // pred_check
          %p238 = pneg %p45
        $region34: #{_forward_impl.1} parent=31 // pred_check_branch
          %240 = sbr.rel (%p238) target = $region36
        $region35: #{_forward_impl.1} parent=31 // pred_region
          %p241 = scmp.lt.s32.totalorder %s20, 1
          %s242 = scalar_select %p241, %s20, 1
          %s243 = smul.addr %s242, 2
          %s244 = smul.addr %s243, 4
          %s245 = scalar_lea.vmem %s0, %s244
        $region36: #{_forward_impl.1} parent=31 // pred_fallthru
          _
      $region32: #{_forward_impl.1} parent=5 // pred_fallthru
        _
      %p246 = scmp.le.s32.totalorder 1, %s13
      %p247 = scmp.lt.s32.totalorder %s13, 3
      %p248 = pnand %p246, %p247
      %p249 = pneg %p248
      // Predicated region
      $region37: #{_forward_impl.1} parent=5 // pred_check
        _
      $region38: #{_forward_impl.1} parent=5 // pred_check_branch
        %251 = sbr.rel (%p248) target = $region40
      $region39: #{_forward_impl.1} parent=5 // pred_region
        %s252 = ssub.s32 %s13, 1
        // Predicated region
        $region41: #{_forward_impl.1} parent=39 // pred_check
          %p253 = pneg %p77
        $region42: #{_forward_impl.1} parent=39 // pred_check_branch
          %255 = sbr.rel (%p253) target = $region44
        $region43: #{_forward_impl.1} parent=39 // pred_region
          %257 = dma.done [#allocation4], 2048
        $region44: #{_forward_impl.1} parent=39 // pred_fallthru
          _
        // Predicated region
        $region45: #{_forward_impl.1} parent=39 // pred_check
          %p258 = pneg %p129
        $region46: #{_forward_impl.1} parent=39 // pred_check_branch
          %260 = sbr.rel (%p258) target = $region48
        $region47: #{_forward_impl.1} parent=39 // pred_region
          %262 = dma.done [#allocation6], 2048
        $region48: #{_forward_impl.1} parent=39 // pred_fallthru
          _
        %p263 = scmp.lt.s32.totalorder %s22, 1
        %s264 = scalar_select %p263, %s22, 1
        %s265 = smul.addr %s264, 2
        %s266 = smul.addr %s265, 4
        %s267 = scalar_lea.vmem %s0, %s266
        %p268 = pneg %p51
        %p269 = pneg %p48
        %p270 = pneg %p77
        %p271 = pneg %p74
        %p272 = scmp.lt.s32.totalorder %s23, 0
        %s273 = scalar_select %p272, %s23, 0
        %s274 = scalar_lea.vmem %s2, %s273
        %p275 = pneg %p103
        %p276 = pneg %p100
        %p277 = pneg %p129
        %p278 = pneg %p126
        %p279 = pneg %p150
        %p280 = pneg %p147
        %p281 = pneg %p176
        %p282 = pneg %p173
        %p283 = scmp.lt.s32.totalorder %s22, 1
        %s284 = scalar_select %p283, %s22, 1
        %s285 = smul.addr %s284, 2
        %s286 = smul.addr %s285, 8
        %s287 = scalar_lea.vmem %s5, %s286
        %p288 = scmp.lt.s32.totalorder %s22, 1
        %s289 = scalar_select %p288, %s22, 1
        %s290 = smul.addr %s289, 2
        %s291 = smul.addr %s290, 4
        %s292 = scalar_lea.vmem %s0, %s291
        %p293 = scmp.lt.s32.totalorder %s23, 0
        %s294 = scalar_select %p293, %s23, 0
        %s295 = scalar_lea.vmem %s2, %s294
        %s296 = smul.u32 16, %s23
        %p297 = scmp.lt.s32.totalorder %s22, 1
        %s298 = scalar_select %p297, %s22, 1
        %s299 = smul.addr %s298, 2
        %s300 = smul.addr %s299, 8
        %s301 = scalar_lea.vmem %s5, %s300
        %p302 = scmp.eq.s32.totalorder %s23, 0
        // Predicated region
        $region49: #{_forward_impl.1} parent=39 // pred_check
          %p303 = pneg %p302
        $region50: #{_forward_impl.1} parent=39 // pred_check_branch
          %305 = sbr.rel (%p303) target = $region52
        $region51: #{_forward_impl.1} parent=39 // pred_region
          %306 = vst [vmem:[#allocation2] sm:$0xff] 0.0
          %307 = vst [vmem:[#allocation2 + $0x8] sm:$0xff] 0.0
        $region52: #{_forward_impl.1} parent=39 // pred_fallthru
          _
        %v308 = vld [vmem:[%s292] sm:$0xff]
        %v309 = vld [vmem:[#allocation3] sm:$0xf]
        %v310 = vld [vmem:[#allocation3 + $0x4] sm:$0xf]
        %v311 = vld [vmem:[#allocation3 + $0x8] sm:$0xf]
        %v312 = vld [vmem:[#allocation3 + $0xc] sm:$0xf]
        %v313 = vld [vmem:[#allocation3 + $0x10] sm:$0xf]
        %v314 = vld [vmem:[#allocation3 + $0x14] sm:$0xf]
        %v315 = vld [vmem:[#allocation3 + $0x18] sm:$0xf]
        %v316 = vld [vmem:[#allocation3 + $0x1c] sm:$0xf]
        %v317 = vld [vmem:[#allocation3 + $0x20] sm:$0xf]
        %v318 = vld [vmem:[#allocation3 + $0x24] sm:$0xf]
        %v319 = vld [vmem:[#allocation3 + $0x28] sm:$0xf]
        %v320 = vld [vmem:[#allocation3 + $0x2c] sm:$0xf]
        %v321 = vld [vmem:[#allocation3 + $0x30] sm:$0xf]
        %v322 = vld [vmem:[#allocation3 + $0x34] sm:$0xf]
        %v323 = vld [vmem:[#allocation3 + $0x38] sm:$0xf]
        %v324 = vld [vmem:[#allocation3 + $0x3c] sm:$0xf]
        %v325 = vld [vmem:[#allocation3 + $0x40] sm:$0xf]
        %v326 = vld [vmem:[#allocation3 + $0x44] sm:$0xf]
        %v327 = vld [vmem:[#allocation3 + $0x48] sm:$0xf]
        %v328 = vld [vmem:[#allocation3 + $0x4c] sm:$0xf]
        %v329 = vld [vmem:[#allocation3 + $0x50] sm:$0xf]
        %v330 = vld [vmem:[#allocation3 + $0x54] sm:$0xf]
        %v331 = vld [vmem:[#allocation3 + $0x58] sm:$0xf]
        %v332 = vld [vmem:[#allocation3 + $0x5c] sm:$0xf]
        %v333 = vld [vmem:[#allocation3 + $0x60] sm:$0xf]
        %v334 = vld [vmem:[#allocation3 + $0x64] sm:$0xf]
        %v335 = vld [vmem:[#allocation3 + $0x68] sm:$0xf]
        %v336 = vld [vmem:[#allocation3 + $0x6c] sm:$0xf]
        %v337 = vld [vmem:[#allocation3 + $0x70] sm:$0xf]
        %v338 = vld [vmem:[#allocation3 + $0x74] sm:$0xf]
        %v339 = vld [vmem:[#allocation3 + $0x78] sm:$0xf]
        %v340 = vld [vmem:[#allocation3 + $0x7c] sm:$0xf]
        %v341 = vld [vmem:[%s295] sm:$0x1]
        %v343 = vperm.slane %v341, 0
        %v346 = vunpack.c.l.b16 %v308
        %v347 = vunpack.c.h.b16 %v308
        %v348 = vpack.c.b16 %v346, %v346
        %v349 = vpack.c.b16 %v347, %v347
        %v384 = vunpack.c.l.b16 %v309
        %v385 = vunpack.c.l.b16 %v310
        %v386 = vunpack.c.l.b16 %v311
        %v387 = vunpack.c.l.b16 %v312
        %v388 = vunpack.c.l.b16 %v313
        %v389 = vunpack.c.l.b16 %v314
        %v390 = vunpack.c.l.b16 %v315
        %v391 = vunpack.c.l.b16 %v316
        %v392 = vunpack.c.l.b16 %v317
        %v393 = vunpack.c.l.b16 %v318
        %v394 = vunpack.c.l.b16 %v319
        %v395 = vunpack.c.l.b16 %v320
        %v396 = vunpack.c.l.b16 %v321
        %v397 = vunpack.c.l.b16 %v322
        %v398 = vunpack.c.l.b16 %v323
        %v399 = vunpack.c.l.b16 %v324
        %v400 = vunpack.c.l.b16 %v325
        %v401 = vunpack.c.l.b16 %v326
        %v402 = vunpack.c.l.b16 %v327
        %v403 = vunpack.c.l.b16 %v328
        %v404 = vunpack.c.l.b16 %v329
        %v405 = vunpack.c.l.b16 %v330
        %v406 = vunpack.c.l.b16 %v331
        %v407 = vunpack.c.l.b16 %v332
        %v408 = vunpack.c.l.b16 %v333
        %v409 = vunpack.c.l.b16 %v334
        %v410 = vunpack.c.l.b16 %v335
        %v411 = vunpack.c.l.b16 %v336
        %v412 = vunpack.c.l.b16 %v337
        %v413 = vunpack.c.l.b16 %v338
        %v414 = vunpack.c.l.b16 %v339
        %v415 = vunpack.c.l.b16 %v340
        %v416 = vpack.c.b16 %v385, %v384
        %v417 = vpack.c.b16 %v387, %v386
        %v418 = vpack.c.b16 %v389, %v388
        %v419 = vpack.c.b16 %v391, %v390
        %v420 = vpack.c.b16 %v393, %v392
        %v421 = vpack.c.b16 %v395, %v394
        %v422 = vpack.c.b16 %v397, %v396
        %v423 = vpack.c.b16 %v399, %v398
        %v424 = vpack.c.b16 %v401, %v400
        %v425 = vpack.c.b16 %v403, %v402
        %v426 = vpack.c.b16 %v405, %v404
        %v427 = vpack.c.b16 %v407, %v406
        %v428 = vpack.c.b16 %v409, %v408
        %v429 = vpack.c.b16 %v411, %v410
        %v430 = vpack.c.b16 %v413, %v412
        %v431 = vpack.c.b16 %v415, %v414
        %448 = vmatpush.bf16.msra.mxu0 %v423
        %449 = vmatpush.bf16.msra.mxu0 %v422
        %450 = vmatpush.bf16.msra.mxu0 %v421
        %451 = vmatpush.bf16.msra.mxu0 %v420
        %452 = vmatpush.bf16.msra.mxu0 %v419
        %453 = vmatpush.bf16.msra.mxu0 %v418
        %454 = vmatpush.bf16.msra.mxu0 %v417
        %455 = vmatpush.bf16.msra.mxu0 %v416
        %456 = vmatmul.bf16.gmra.mxu0 %v348
        %v457 = vpop.f32.mrf.mxu0
        %v458 = vadd.f32 %v343, %v457
        %v459 = vpop.f32.mrf.mxu0
        %460 = vdwg.mxu0
        %461 = vmatpush.bf16.msra.mxu0 %v431
        %462 = vmatpush.bf16.msra.mxu0 %v430
        %463 = vmatpush.bf16.msra.mxu0 %v429
        %464 = vmatpush.bf16.msra.mxu0 %v428
        %465 = vmatpush.bf16.msra.mxu0 %v427
        %466 = vmatpush.bf16.msra.mxu0 %v426
        %467 = vmatpush.bf16.msra.mxu0 %v425
        %468 = vmatpush.bf16.msra.mxu0 %v424
        %469 = vmatmul.bf16.gmra.mxu0 %v349
        %v470 = vpop.f32.mrf.mxu0
        %v471 = vadd.f32 %v458, %v470
        %v472 = vpop.f32.mrf.mxu0
        %473 = vdwg.mxu0
        %v474 = vmax.f32 %v471, 0.0
        %v475 = vld [vmem:[#allocation2] sm:$0xff]
        %v476 = vld [vmem:[#allocation2 + $0x8] sm:$0xff]
        %v477 = vpack.c.bf16 %v474, %v474
        %v478 = vld [vmem:[#allocation5] sm:$0xff]
        %v479 = vld [vmem:[#allocation5 + $0x8] sm:$0xff]
        %v480 = vld [vmem:[#allocation5 + $0x10] sm:$0xff]
        %v481 = vld [vmem:[#allocation5 + $0x18] sm:$0xff]
        %v482 = vld [vmem:[#allocation5 + $0x20] sm:$0xff]
        %v483 = vld [vmem:[#allocation5 + $0x28] sm:$0xff]
        %v484 = vld [vmem:[#allocation5 + $0x30] sm:$0xff]
        %v485 = vld [vmem:[#allocation5 + $0x38] sm:$0xff]
        %v486 = vld [vmem:[#allocation5 + $0x40] sm:$0xff]
        %v487 = vld [vmem:[#allocation5 + $0x48] sm:$0xff]
        %v488 = vld [vmem:[#allocation5 + $0x50] sm:$0xff]
        %v489 = vld [vmem:[#allocation5 + $0x58] sm:$0xff]
        %v490 = vld [vmem:[#allocation5 + $0x60] sm:$0xff]
        %v491 = vld [vmem:[#allocation5 + $0x68] sm:$0xff]
        %v492 = vld [vmem:[#allocation5 + $0x70] sm:$0xff]
        %v493 = vld [vmem:[#allocation5 + $0x78] sm:$0xff]
        %v510 = vunpack.c.l.b16 %v478
        %v511 = vunpack.c.h.b16 %v478
        %v512 = vunpack.c.l.b16 %v479
        %v513 = vunpack.c.h.b16 %v479
        %v514 = vunpack.c.l.b16 %v480
        %v515 = vunpack.c.h.b16 %v480
        %v516 = vunpack.c.l.b16 %v481
        %v517 = vunpack.c.h.b16 %v481
        %v518 = vunpack.c.l.b16 %v482
        %v519 = vunpack.c.h.b16 %v482
        %v520 = vunpack.c.l.b16 %v483
        %v521 = vunpack.c.h.b16 %v483
        %v522 = vunpack.c.l.b16 %v484
        %v523 = vunpack.c.h.b16 %v484
        %v524 = vunpack.c.l.b16 %v485
        %v525 = vunpack.c.h.b16 %v485
        %v526 = vunpack.c.l.b16 %v486
        %v527 = vunpack.c.h.b16 %v486
        %v528 = vunpack.c.l.b16 %v487
        %v529 = vunpack.c.h.b16 %v487
        %v530 = vunpack.c.l.b16 %v488
        %v531 = vunpack.c.h.b16 %v488
        %v532 = vunpack.c.l.b16 %v489
        %v533 = vunpack.c.h.b16 %v489
        %v534 = vunpack.c.l.b16 %v490
        %v535 = vunpack.c.h.b16 %v490
        %v536 = vunpack.c.l.b16 %v491
        %v537 = vunpack.c.h.b16 %v491
        %v538 = vunpack.c.l.b16 %v492
        %v539 = vunpack.c.h.b16 %v492
        %v540 = vunpack.c.l.b16 %v493
        %v541 = vunpack.c.h.b16 %v493
        %v542 = vpack.c.b16 %v512, %v510
        %v543 = vpack.c.b16 %v513, %v511
        %v544 = vpack.c.b16 %v516, %v514
        %v545 = vpack.c.b16 %v517, %v515
        %v546 = vpack.c.b16 %v520, %v518
        %v547 = vpack.c.b16 %v521, %v519
        %v548 = vpack.c.b16 %v524, %v522
        %v549 = vpack.c.b16 %v525, %v523
        %v550 = vpack.c.b16 %v528, %v526
        %v551 = vpack.c.b16 %v529, %v527
        %v552 = vpack.c.b16 %v532, %v530
        %v553 = vpack.c.b16 %v533, %v531
        %v554 = vpack.c.b16 %v536, %v534
        %v555 = vpack.c.b16 %v537, %v535
        %v556 = vpack.c.b16 %v540, %v538
        %v557 = vpack.c.b16 %v541, %v539
        %574 = vmatpush.bf16.msra.mxu0 %v556
        %575 = vmatpush.bf16.msra.mxu0 %v554
        %576 = vmatpush.bf16.msra.mxu0 %v552
        %577 = vmatpush.bf16.msra.mxu0 %v550
        %578 = vmatpush.bf16.msra.mxu0 %v548
        %579 = vmatpush.bf16.msra.mxu0 %v546
        %580 = vmatpush.bf16.msra.mxu0 %v544
        %581 = vmatpush.bf16.msra.mxu0 %v542
        %582 = vmatmul.bf16.gmra.mxu0 %v477
        %v583 = vpop.f32.mrf.mxu0
        %v584 = vadd.f32 0.0, %v583
        %v585 = vpop.f32.mrf.mxu0
        %586 = vdwg.mxu0
        %587 = vmatpush.bf16.msra.mxu0 %v557
        %588 = vmatpush.bf16.msra.mxu0 %v555
        %589 = vmatpush.bf16.msra.mxu0 %v553
        %590 = vmatpush.bf16.msra.mxu0 %v551
        %591 = vmatpush.bf16.msra.mxu0 %v549
        %592 = vmatpush.bf16.msra.mxu0 %v547
        %593 = vmatpush.bf16.msra.mxu0 %v545
        %594 = vmatpush.bf16.msra.mxu0 %v543
        %595 = vmatmul.bf16.gmra.mxu0 %v477
        %v596 = vpop.f32.mrf.mxu0
        %v597 = vadd.f32 0.0, %v596
        %v598 = vpop.f32.mrf.mxu0
        %599 = vdwg.mxu0
        %v600 = vadd.f32 %v475, %v584
        %v601 = vadd.f32 %v476, %v597
        %602 = vst [vmem:[#allocation2] sm:$0xff] %v600
        %603 = vst [vmem:[#allocation2 + $0x8] sm:$0xff] %v601
        // Predicated region
        $region53: #{_forward_impl.1} parent=39 // pred_check
          %p604 = pneg %p302
        $region54: #{_forward_impl.1} parent=39 // pred_check_branch
          %606 = sbr.rel (%p604) target = $region56
        $region55: #{_forward_impl.1} parent=39 // pred_region
          %v607 = vld [vmem:[#allocation2] sm:$0xff]
          %v608 = vld [vmem:[#allocation2 + $0x8] sm:$0xff]
          %v609 = vld [vmem:[%s4] sm:$0x3]
          %v611 = vperm.slane %v609, 0
          %v612 = vperm.slane %v609, 1
          %v615 = vadd.f32 %v607, %v611
          %v616 = vadd.f32 %v608, %v612
          %617 = vst [vmem:[%s301] sm:$0xff] %v615
          %618 = vst [vmem:[%s301 + $0x8] sm:$0xff] %v616
        $region56: #{_forward_impl.1} parent=39 // pred_fallthru
          _
        %p619 = scmp.lt.s32.totalorder %s22, 1
        %s620 = scalar_select %p619, %s22, 1
        %s621 = smul.addr %s620, 2
        %s622 = smul.addr %s621, 8
        %s623 = scalar_lea.vmem %s5, %s622
        // Predicated region
        $region57: #{_forward_impl.1} parent=39 // pred_check
          %p624 = pneg %p173
        $region58: #{_forward_impl.1} parent=39 // pred_check_branch
          %626 = sbr.rel (%p624) target = $region60
        $region59: #{_forward_impl.1} parent=39 // pred_region
          _
        $region60: #{_forward_impl.1} parent=39 // pred_fallthru
          _
      $region40: #{_forward_impl.1} parent=5 // pred_fallthru
        _
      %p627 = scmp.le.s32.totalorder 2, %s13
      // Predicated region
      $region61: #{_forward_impl.1} parent=5 // pred_check
        %p628 = pneg %p627
      $region62: #{_forward_impl.1} parent=5 // pred_check_branch
        %630 = sbr.rel (%p628) target = $region64
      $region63: #{_forward_impl.1} parent=5 // pred_region
        %s631 = ssub.s32 %s13, 2
        // Predicated region
        $region65: #{_forward_impl.1} parent=63 // pred_check
          %p632 = pneg %p179
        $region66: #{_forward_impl.1} parent=63 // pred_check_branch
          %634 = sbr.rel (%p632) target = $region68
        $region67: #{_forward_impl.1} parent=63 // pred_region
          %p635 = scmp.lt.s32.totalorder %s24, 1
          %s636 = scalar_select %p635, %s24, 1
          %s637 = smul.addr %s636, 2
          %s638 = smul.addr %s637, 8
          %s639 = scalar_lea.vmem %s5, %s638
        $region68: #{_forward_impl.1} parent=63 // pred_fallthru
          _
      $region64: #{_forward_impl.1} parent=5 // pred_fallthru
        _
    $region6: #{_forward_impl.1} parent=1 // loop_footer
      %s17 = sadd.s32 1, %s13
    $region7: #{_forward_impl.1} parent=1 // loop_footer_branch
      %12 = sbr.rel target = $region3
    $region8: #{_forward_impl.1} parent=1 // loop_exit
      _
    %640 = vsyncpa [#allocation4], 1
    %s641 = scalar_lea.sflag [#allocation4], 1
    %642 = vsyncpa %s641, 1
    %643 = vsyncpa [#allocation6], 1

</llo_original>
